<compile_context>
chip_gen: v7x
topology: tpu7x:2x2x1
jax: 0.10.0
libtpu: 0.0.40
codegen_flags: <defaults>
</compile_context>

<pallas_src>
import functools

import jax
import jax.numpy as jnp
from jax.experimental import pallas as pl
from jax.experimental.pallas import tpu as pltpu


def _bn_pad_kernel(x_ref, scale_ref, shift_ref, o_ref, *, pad, H, W):
    """One grid step: normalize a (1, TC, H, W) slab and emit the padded
    (1, TC, Hp, Wp) tile with a single unmasked full-tile store."""
    tc = x_ref.shape[1]
    Wp = W + 2 * pad

    scale = scale_ref[...]                      # (1, TC, 1, 1) f32
    shift = shift_ref[...]                      # (1, TC, 1, 1) f32 == border value

    # BN in f32 to match PyTorch numerics (no-op for f32 inputs).
    y = x_ref[...].astype(jnp.float32) * scale + shift          # (1, TC, H, W)

    if pad > 0:
        # Assemble the padded tile as a value (lane/sublane shifts via concat)
        # so the output is written with ONE lane-dense full-tile store instead
        # of an offset interior store + 4 narrow masked border-strip stores.
        col = jnp.broadcast_to(shift, (1, tc, H, pad))
        y = jnp.concatenate([col, y, col], axis=3)               # (1, TC, H, Wp)
        row = jnp.broadcast_to(shift, (1, tc, pad, Wp))
        y = jnp.concatenate([row, y, row], axis=2)               # (1, TC, Hp, Wp)

    o_ref[...] = y.astype(o_ref.dtype)


def _round_up(a, b):
    return ((a + b - 1) // b) * b


def bn_and_pad(x, gamma, beta, running_mean, running_var, *,
               eps=1e-5, pad_pixels=1, affine=True, channel_block=None,
               vmem_limit_bytes=None):
    N, C, H, W = x.shape
    pad = int(pad_pixels)
    Hp, Wp = H + 2 * pad, W + 2 * pad

    # Fold BN (eval mode / running statistics) into per-channel scale & shift.
    inv_std = jax.lax.rsqrt(running_var.astype(jnp.float32) + eps)
    if affine:
        scale = gamma.astype(jnp.float32) * inv_std
        shift = beta.astype(jnp.float32) - running_mean.astype(jnp.float32) * scale
    else:
        scale = inv_std
        shift = -running_mean.astype(jnp.float32) * inv_std
    scale4 = scale.reshape(1, C, 1, 1)
    shift4 = shift.reshape(1, C, 1, 1)

    itemsize = jnp.dtype(x.dtype).itemsize

    # ---- per-generation working-set target & VMEM limit ---------------------
    try:
        kind = jax.devices()[0].device_kind.lower()
    except Exception:  # pragma: no cover - defensive; fall through to defaults
        kind = ""
    if "v7" in kind:
        # v7x: 64 MiB physical VMEM (32 MiB scoped default) -> stay modest.
        target_ws_bytes = 6 * 1024 * 1024
        default_vmem_limit = 40 * 1024 * 1024
    elif ("v5" in kind) or ("v6" in kind):
        # v5e/v6e: 128 MiB VMEM, pure HBM-bandwidth kernel -> bigger tiles.
        target_ws_bytes = 12 * 1024 * 1024
        default_vmem_limit = 64 * 1024 * 1024
    else:
        target_ws_bytes = 6 * 1024 * 1024
        default_vmem_limit = 40 * 1024 * 1024
    if vmem_limit_bytes is None:
        vmem_limit_bytes = default_vmem_limit

    # (8,128)-tile-padded per-channel VMEM footprint, double-buffered — the real
    # on-chip size, not the logical byte count (matters badly when W << 128).
    sub = max(8, 32 // itemsize)             # sublane multiple: 8 f32, 16 bf16, 32 int8
    x_tile = _round_up(H, sub) * _round_up(W, 128) * itemsize
    o_tile = _round_up(Hp, sub) * _round_up(Wp, 128) * itemsize
    ss_tile = 2 * 8 * 128 * 4                # scale + shift: one (8,128) f32 tile each
    per_channel_2buf = 2 * (x_tile + o_tile + ss_tile)

    divisors = [d for d in range(1, C + 1) if C % d == 0]
    hard_cap = int(0.75 * vmem_limit_bytes)

    if channel_block is None:
        target_tc = max(1, target_ws_bytes // per_channel_2buf)
        fitting = [d for d in divisors if d * per_channel_2buf <= hard_cap] or [1]
        at_or_above = [d for d in fitting if d >= target_tc]
        tc = min(at_or_above) if at_or_above else max(fitting)
    else:
        tc = int(channel_block)
        while C % tc:
            tc -= 1

    # Keep the grid at >= 2 steps when batch=1 so both v7x TensorCores get work
    # (a single extra ~0.35us step is harmless on single-core chips).
    if (C // tc) * N == 1 and tc > 1:
        smaller = [d for d in divisors if d < tc]
        if smaller:
            tc = max(smaller)
    # TODO(synk): for awkward C (e.g. prime) the divisor constraint can collapse
    #             tc to 1; padding C in the caller avoids that perf cliff.

    kernel = functools.partial(_bn_pad_kernel, pad=pad, H=H, W=W)

    # Purely HBM-bandwidth-bound elementwise op: tell XLA so it can overlap it.
    cost = pl.CostEstimate(
        flops=2 * N * C * H * W,
        transcendentals=0,
        bytes_accessed=N * C * (H * W + Hp * Wp) * itemsize + 2 * C * 4,
    )

    return pl.pallas_call(
        kernel,
        out_shape=jax.ShapeDtypeStruct((N, C, Hp, Wp), x.dtype),
        # Channel-block OUTER, batch INNER: scale/shift block index is constant
        # across the inner axis -> fetched once per channel block.
        grid=(C // tc, N),
        in_specs=[
            pl.BlockSpec((1, tc, H, W), lambda cb, n: (n, cb, 0, 0)),   # x slab
            pl.BlockSpec((1, tc, 1, 1), lambda cb, n: (0, cb, 0, 0)),   # scale (VMEM)
            pl.BlockSpec((1, tc, 1, 1), lambda cb, n: (0, cb, 0, 0)),   # shift (VMEM)
        ],
        out_specs=pl.BlockSpec((1, tc, Hp, Wp), lambda cb, n: (n, cb, 0, 0)),
        compiler_params=pltpu.CompilerParams(
            dimension_semantics=("parallel", "parallel"),
            vmem_limit_bytes=vmem_limit_bytes),
        cost_estimate=cost,
    )(x, scale4, shift4)


def _reference(x, gamma, beta, running_mean, running_var, *, eps, pad, affine=True):
    inv_std = 1.0 / jnp.sqrt(running_var + eps)
    if affine:
        scale = gamma * inv_std
        shift = beta - running_mean * scale
    else:
        scale = inv_std
        shift = -running_mean * inv_std
    y = x * scale[None, :, None, None] + shift[None, :, None, None]
    out = jnp.pad(y, ((0, 0), (0, 0), (pad, pad), (pad, pad)))
    if pad > 0:
        pad_v = shift[None, :, None, None]
        out = out.at[:, :, 0:pad, :].set(pad_v)
        out = out.at[:, :, -pad:, :].set(pad_v)
        out = out.at[:, :, :, 0:pad].set(pad_v)
        out = out.at[:, :, :, -pad:].set(pad_v)
    return out


if __name__ == "__main__":
    N, C, H, W = 2, 4, 16, 16
    pad_pixels = 1
    eps = 1e-5

    key = jax.random.PRNGKey(0)
    x = jax.random.normal(key, (N, C, H, W), dtype=jnp.float32)

    # Deterministic, non-trivial BN parameters / running statistics.
    c_idx = jnp.arange(C, dtype=jnp.float32)
    gamma = 1.0 + 0.1 * c_idx                     # bn.weight
    beta = 0.05 * c_idx - 0.1                     # bn.bias
    running_mean = 0.2 * c_idx - 0.3
    running_var = 1.0 + 0.15 * c_idx

    # 1) Default auto channel blocking, affine=True.
    out = jax.block_until_ready(
        bn_and_pad(x, gamma, beta, running_mean, running_var,
                   eps=eps, pad_pixels=pad_pixels, affine=True))
    ref = _reference(x, gamma, beta, running_mean, running_var,
                     eps=eps, pad=pad_pixels, affine=True)
    assert out.shape == (N, C, H + 2 * pad_pixels, W + 2 * pad_pixels)
    assert jnp.allclose(out, ref, atol=1e-5, rtol=1e-5), "mismatch vs reference (affine)"

    # 2) Forced smaller channel block (exercises multi-block channel grid) + wider pad.
    out2 = jax.block_until_ready(
        bn_and_pad(x, gamma, beta, running_mean, running_var,
                   eps=eps, pad_pixels=2, affine=True, channel_block=2))
    ref2 = _reference(x, gamma, beta, running_mean, running_var,
                      eps=eps, pad=2, affine=True)
    assert jnp.allclose(out2, ref2, atol=1e-5, rtol=1e-5), "mismatch vs reference (pad=2)"

    # 3) affine=False path.
    out3 = jax.block_until_ready(
        bn_and_pad(x, gamma, beta, running_mean, running_var,
                   eps=eps, pad_pixels=pad_pixels, affine=False))
    ref3 = _reference(x, gamma, beta, running_mean, running_var,
                      eps=eps, pad=pad_pixels, affine=False)
    assert jnp.allclose(out3, ref3, atol=1e-5, rtol=1e-5), "mismatch vs reference (no affine)"

    print("KERNEL_OK")
</pallas_src>

<mosaic_0001>
module attributes {stable_mosaic.version = 11 : i64} {
  func.func @_bn_pad_kernel(%arg0: i32, %arg1: i32, %arg2: memref<1x4x16x16xf32, #tpu.memory_space<vmem>>, %arg3: memref<1x4x1x1xf32, #tpu.memory_space<vmem>>, %arg4: memref<1x4x1x1xf32, #tpu.memory_space<vmem>>, %arg5: memref<1x4x18x18xf32, #tpu.memory_space<vmem>>) attributes {dimension_semantics = [#tpu.dimension_semantics<parallel>, #tpu.dimension_semantics<parallel>], iteration_bounds = array<i64: 1, 2>, scalar_prefetch = 0 : i64, scratch_operands = 0 : i64, tpu.core_type = #tpu.core_type<tc>, window_params = [{transform_indices = @transform_0, window_bounds = array<i64: 1, 4, 16, 16>}, {transform_indices = @transform_1, window_bounds = array<i64: 1, 4, 1, 1>}, {transform_indices = @transform_2, window_bounds = array<i64: 1, 4, 1, 1>}, {transform_indices = @transform_3, window_bounds = array<i64: 1, 4, 18, 18>}]} {
    %c0 = arith.constant 0 : index
    %c0_0 = arith.constant 0 : index
    %c0_1 = arith.constant 0 : index
    %c0_2 = arith.constant 0 : index
    %0 = vector.load %arg3[%c0, %c0_0, %c0_1, %c0_2] : memref<1x4x1x1xf32, #tpu.memory_space<vmem>>, vector<1x4x1x1xf32>
    %c0_3 = arith.constant 0 : index
    %c0_4 = arith.constant 0 : index
    %c0_5 = arith.constant 0 : index
    %c0_6 = arith.constant 0 : index
    %1 = vector.load %arg4[%c0_3, %c0_4, %c0_5, %c0_6] : memref<1x4x1x1xf32, #tpu.memory_space<vmem>>, vector<1x4x1x1xf32>
    %c0_7 = arith.constant 0 : index
    %c0_8 = arith.constant 0 : index
    %c0_9 = arith.constant 0 : index
    %c0_10 = arith.constant 0 : index
    %2 = vector.load %arg2[%c0_7, %c0_8, %c0_9, %c0_10] : memref<1x4x16x16xf32, #tpu.memory_space<vmem>>, vector<1x4x16x16xf32>
    %3 = vector.broadcast %0 : vector<1x4x1x1xf32> to vector<1x4x16x16xf32>
    %4 = arith.mulf %2, %3 : vector<1x4x16x16xf32>
    %5 = vector.broadcast %1 : vector<1x4x1x1xf32> to vector<1x4x16x16xf32>
    %6 = arith.addf %4, %5 : vector<1x4x16x16xf32>
    %7 = vector.shape_cast %1 : vector<1x4x1x1xf32> to vector<1x4x1x1xf32>
    %8 = vector.broadcast %7 : vector<1x4x1x1xf32> to vector<1x4x16x1xf32>
    %9 = tpu.concatenate %8, %6, %8 in 3 : vector<1x4x16x1xf32>, vector<1x4x16x16xf32>, vector<1x4x16x1xf32> -> vector<1x4x16x18xf32>
    %10 = vector.shape_cast %1 : vector<1x4x1x1xf32> to vector<1x4x1x1xf32>
    %11 = vector.broadcast %10 : vector<1x4x1x1xf32> to vector<1x4x1x18xf32>
    %12 = tpu.concatenate %11, %9, %11 in 2 : vector<1x4x1x18xf32>, vector<1x4x16x18xf32>, vector<1x4x1x18xf32> -> vector<1x4x18x18xf32>
    %c0_11 = arith.constant 0 : index
    %c0_12 = arith.constant 0 : index
    %c0_13 = arith.constant 0 : index
    %c0_14 = arith.constant 0 : index
    %13 = vector.load %arg5[%c0_11, %c0_12, %c0_13, %c0_14] : memref<1x4x18x18xf32, #tpu.memory_space<vmem>>, vector<1x4x18x18xf32>
    tpu.vector_store %arg5[%c0_11, %c0_12, %c0_13, %c0_14], %12 {strides = array<i32>} : memref<1x4x18x18xf32, #tpu.memory_space<vmem>>, vector<1x4x18x18xf32>,
    return
  }
  func.func @transform_0(%arg0: i32, %arg1: i32) -> (i32, i32, i32, i32) {
    %c0_i32 = arith.constant 0 : i32
    %c0_i32_0 = arith.constant 0 : i32
    %c0_i32_1 = arith.constant 0 : i32
    return %arg1, %arg0, %c0_i32, %c0_i32_0 : i32, i32, i32, i32
  }
  func.func @transform_1(%arg0: i32, %arg1: i32) -> (i32, i32, i32, i32) {
    %c0_i32 = arith.constant 0 : i32
    %c0_i32_0 = arith.constant 0 : i32
    %c0_i32_1 = arith.constant 0 : i32
    %c0_i32_2 = arith.constant 0 : i32
    return %c0_i32, %arg0, %c0_i32_0, %c0_i32_1 : i32, i32, i32, i32
  }
  func.func @transform_2(%arg0: i32, %arg1: i32) -> (i32, i32, i32, i32) {
    %c0_i32 = arith.constant 0 : i32
    %c0_i32_0 = arith.constant 0 : i32
    %c0_i32_1 = arith.constant 0 : i32
    %c0_i32_2 = arith.constant 0 : i32
    return %c0_i32, %arg0, %c0_i32_0, %c0_i32_1 : i32, i32, i32, i32
  }
  func.func @transform_3(%arg0: i32, %arg1: i32) -> (i32, i32, i32, i32) {
    %c0_i32 = arith.constant 0 : i32
    %c0_i32_0 = arith.constant 0 : i32
    %c0_i32_1 = arith.constant 0 : i32
    return %arg1, %arg0, %c0_i32, %c0_i32_0 : i32, i32, i32, i32
  }
}

</mosaic_0001>

<llo_original>
// kernel: tpu_custom_call.1
$region0: #{tpu_custom_call.1}
  #allocation0 [shape = 'u32[]', space=smem, size = 0x4, offset = 0x4, fixed_abs, tag = 'smem constant byte address 0x4 - core index']
  #allocation1 [shape = 'u32[144,128]{1,0:T(1,128)}', space=vmem, size = 0x12000, scoped, tag = 'internal scratch']
  %s0 = inlined_call_operand.hbm [shape: f32[2,4,16,16], index: 0, kind: input, shape index: {}]
  %s1 = inlined_call_operand.vmem [shape: f32[1,4,1,1], index: 1, kind: input, shape index: {}]
  %s2 = inlined_call_operand.vmem [shape: f32[1,4,1,1], index: 2, kind: input, shape index: {}]
  %s3 = inlined_call_operand.vmem [shape: f32[2,4,18,18], index: 3, kind: output, shape index: {}]
  %s4 = sld [smem:[#allocation0]]
  $region49: #{tpu_custom_call.1} parent=0
    _
  %s6 = ssub.s32 1, %s4
  %s7 = scalar_select 0, %s6, %s4
  $region1: #{tpu_custom_call.1} parent=0
    #allocation2 [shape = 'u8[65536]{0}', space=vmem, size = 0x10000, scoped, tag = 'input window, operand 0']
    #allocation3 [shape = 's32[2]{0}', space=sflag, size = 0x8, scoped, tag = 'scoped memory for tpu_custom_call.1']
    %8 = vsyncpa [#allocation3], 0
    %s9 = scalar_lea.sflag [#allocation3], 1
    %10 = vsyncpa %s9, 0
    loop: start=0, step=1, limit=4
    $region2: #{tpu_custom_call.1} parent=1 // loop_pre_header
      _
    $region3: #{tpu_custom_call.1} parent=1 // loop_header
      %s12 = sphi 0, %s16
      %p13 = scmp.ge.s32.totalorder %s12, 4
      %s19 = sphi 0, %s31
      %s20 = sphi 0, %s27
      %s21 = sphi 0, %s19
      %s22 = sphi 0, %s20
      %s23 = sphi 0, %s21
      %s24 = sphi 0, %s22
      %s36 = sphi 0, %s38
      %s39 = sphi 0, %s36
      %s40 = sphi 0, %s39
      %s56 = sphi 0, %s40
      %s62 = sphi 0, %s64
      %s65 = sphi 0, %s62
      %s66 = sphi 0, %s65
      %s82 = sphi 0, %s66
      %s88 = sphi 0, %s90
      %s91 = sphi 0, %s88
      %s92 = sphi 0, %s91
      %s108 = sphi 0, %s92
      %s116 = sphi 0, %s118
      %s119 = sphi 0, %s116
      %s120 = sphi 0, %s119
      %s136 = sphi 0, %s120
    $region4: #{tpu_custom_call.1} parent=1 // loop_header_branch
      %15 = sbr.rel (%p13) target = $region8
    $region5: #{tpu_custom_call.1} parent=1 // loop_body
      %s17 = ssub.s32 %s12, 1
      %s18 = ssub.s32 %s12, 2
      %s25 = sadd.s32 1, %s20
      %p26 = scmp.ge.s32.totalorder %s25, 2
      %s27 = scalar_select %p26, 0, %s25
      %s28 = sadd.s32 1, %s19
      %s29 = scalar_select %p26, %s28, %s19
      %p30 = scmp.ge.s32.totalorder %s29, 1
      %s31 = scalar_select %p30, 0, %s29
      %s32 = ssub.s32 %s20, %s27
      %s33 = ssub.s32 %s19, %s31
      %s34 = sor.u32 %s32, %s33
      %p35 = scmp.eq.s32.totalorder %s34, 0
      %s37 = sadd.s32 %s36, 1
      %s38 = scalar_select %p35, %s36, %s37
      %p41 = pneg %p35
      %p42 = scmp.eq.s32.totalorder %s12, 1
      %p43 = por %p41, %p42
      %p44 = scmp.ne.s32.totalorder %s36, %s39
      %p45 = scmp.eq.s32.totalorder %s12, 0
      %p46 = por %p44, %p45
      %p47 = scmp.ne.s32.totalorder %s36, %s39
      %p48 = scmp.eq.s32.totalorder %s17, 1
      %p49 = por %p47, %p48
      %p50 = scmp.ne.s32.totalorder %s39, %s40
      %p51 = scmp.eq.s32.totalorder %s17, 0
      %p52 = por %p50, %p51
      %p53 = scmp.ne.s32.totalorder %s39, %s40
      %p54 = scmp.eq.s32.totalorder %s18, 1
      %p55 = por %p53, %p54
      %p57 = scmp.ne.s32.totalorder %s40, %s56
      %p58 = scmp.eq.s32.totalorder %s18, 0
      %p59 = por %p57, %p58
      %s60 = ssub.s32 %s19, %s31
      %p61 = scmp.eq.s32.totalorder %s60, 0
      %s63 = sadd.s32 %s62, 1
      %s64 = scalar_select %p61, %s62, %s63
      %p67 = pneg %p61
      %p68 = scmp.eq.s32.totalorder %s12, 1
      %p69 = por %p67, %p68
      %p70 = scmp.ne.s32.totalorder %s62, %s65
      %p71 = scmp.eq.s32.totalorder %s12, 0
      %p72 = por %p70, %p71
      %p73 = scmp.ne.s32.totalorder %s62, %s65
      %p74 = scmp.eq.s32.totalorder %s17, 1
      %p75 = por %p73, %p74
      %p76 = scmp.ne.s32.totalorder %s65, %s66
      %p77 = scmp.eq.s32.totalorder %s17, 0
      %p78 = por %p76, %p77
      %p79 = scmp.ne.s32.totalorder %s65, %s66
      %p80 = scmp.eq.s32.totalorder %s18, 1
      %p81 = por %p79, %p80
      %p83 = scmp.ne.s32.totalorder %s66, %s82
      %p84 = scmp.eq.s32.totalorder %s18, 0
      %p85 = por %p83, %p84
      %s86 = ssub.s32 %s19, %s31
      %p87 = scmp.eq.s32.totalorder %s86, 0
      %s89 = sadd.s32 %s88, 1
      %s90 = scalar_select %p87, %s88, %s89
      %p93 = pneg %p87
      %p94 = scmp.eq.s32.totalorder %s12, 1
      %p95 = por %p93, %p94
      %p96 = scmp.ne.s32.totalorder %s88, %s91
      %p97 = scmp.eq.s32.totalorder %s12, 0
      %p98 = por %p96, %p97
      %p99 = scmp.ne.s32.totalorder %s88, %s91
      %p100 = scmp.eq.s32.totalorder %s17, 1
      %p101 = por %p99, %p100
      %p102 = scmp.ne.s32.totalorder %s91, %s92
      %p103 = scmp.eq.s32.totalorder %s17, 0
      %p104 = por %p102, %p103
      %p105 = scmp.ne.s32.totalorder %s91, %s92
      %p106 = scmp.eq.s32.totalorder %s18, 1
      %p107 = por %p105, %p106
      %p109 = scmp.ne.s32.totalorder %s92, %s108
      %p110 = scmp.eq.s32.totalorder %s18, 0
      %p111 = por %p109, %p110
      %s112 = ssub.s32 %s20, %s27
      %s113 = ssub.s32 %s19, %s31
      %s114 = sor.u32 %s112, %s113
      %p115 = scmp.eq.s32.totalorder %s114, 0
      %s117 = sadd.s32 %s116, 1
      %s118 = scalar_select %p115, %s116, %s117
      %p121 = pneg %p115
      %p122 = scmp.eq.s32.totalorder %s12, 1
      %p123 = por %p121, %p122
      %p124 = scmp.ne.s32.totalorder %s116, %s119
      %p125 = scmp.eq.s32.totalorder %s12, 0
      %p126 = por %p124, %p125
      %p127 = scmp.ne.s32.totalorder %s116, %s119
      %p128 = scmp.eq.s32.totalorder %s17, 1
      %p129 = por %p127, %p128
      %p130 = scmp.ne.s32.totalorder %s119, %s120
      %p131 = scmp.eq.s32.totalorder %s17, 0
      %p132 = por %p130, %p131
      %p133 = scmp.ne.s32.totalorder %s119, %s120
      %p134 = scmp.eq.s32.totalorder %s18, 1
      %p135 = por %p133, %p134
      %p137 = scmp.ne.s32.totalorder %s120, %s136
      %p138 = scmp.eq.s32.totalorder %s18, 0
      %p139 = por %p137, %p138
      %p140 = scmp.le.s32.totalorder 1, %s12
      %p141 = scmp.lt.s32.totalorder %s12, 3
      %p142 = pnand %p140, %p141
      %p143 = pneg %p142
      // Predicated region
      $region9: #{tpu_custom_call.1} parent=5 // pred_check
        _
      $region10: #{tpu_custom_call.1} parent=5 // pred_check_branch
        %145 = sbr.rel (%p142) target = $region12
      $region11: #{tpu_custom_call.1} parent=5 // pred_region
        %s146 = ssub.s32 %s12, 1
        // Predicated region
        $region13: #{tpu_custom_call.1} parent=11 // pred_check
          %p147 = pneg %p78
        $region14: #{tpu_custom_call.1} parent=11 // pred_check_branch
          %149 = sbr.rel (%p147) target = $region16
        $region15: #{tpu_custom_call.1} parent=11 // pred_region
          %s150 = smul.u32 4, %s21
          %p151 = scmp.lt.s32.totalorder %s150, 3
          %s152 = scalar_select %p151, %s150, 3
          %s153 = scalar_lea.vmem %s1, %s152
          %s154 = smul.u32 4, %s21
        $region16: #{tpu_custom_call.1} parent=11 // pred_fallthru
          _
        // Predicated region
        $region17: #{tpu_custom_call.1} parent=11 // pred_check
          %p155 = pneg %p104
        $region18: #{tpu_custom_call.1} parent=11 // pred_check_branch
          %157 = sbr.rel (%p155) target = $region20
        $region19: #{tpu_custom_call.1} parent=11 // pred_region
          %s158 = smul.u32 4, %s21
          %p159 = scmp.lt.s32.totalorder %s158, 3
          %s160 = scalar_select %p159, %s158, 3
          %s161 = scalar_lea.vmem %s2, %s160
          %s162 = smul.u32 4, %s21
        $region20: #{tpu_custom_call.1} parent=11 // pred_fallthru
          _
      $region12: #{tpu_custom_call.1} parent=5 // pred_fallthru
        _
      %p163 = scmp.lt.s32.totalorder %s12, 2
      // Predicated region
      $region21: #{tpu_custom_call.1} parent=5 // pred_check
        %p164 = pneg %p163
      $region22: #{tpu_custom_call.1} parent=5 // pred_check_branch
        %166 = sbr.rel (%p164) target = $region24
      $region23: #{tpu_custom_call.1} parent=5 // pred_region
        // Predicated region
        $region25: #{tpu_custom_call.1} parent=23 // pred_check
          %p167 = pneg %p46
        $region26: #{tpu_custom_call.1} parent=23 // pred_check_branch
          %169 = sbr.rel (%p167) target = $region28
        $region27: #{tpu_custom_call.1} parent=23 // pred_region
          %s170 = sand.u32 %s36, 1
          %s171 = scalar_lea.sflag [#allocation3], %s170
          %s172 = sand.u32 %s36, 1
          %s173 = smul.addr %s172, 64
          %s174 = scalar_lea.vmem [#allocation2], %s173
          %s175 = smul.u32 4, %s19
          %s177 = ssub.s32 1024, 1024
          %178 = vsyncadd %s171, %s177
          %s179 = smul.addr %s175, 2
          %s180 = smul.addr %s20, 8
          %s181 = sadd.s32 %s179, %s180
          %s182 = smul.addr %s181, 128
          %s183 = scalar_lea.hbm %s0, %s182
          %s184 = sshll.u32 %s174, 4
          %s185 = int_to_ptr.vmem [resolvable:$true] %s184
          %190 = dma.hbm_to_vmem [thread:$0]  %s183, 1024, %s185, %s171, 128, 128, 8
        $region28: #{tpu_custom_call.1} parent=23 // pred_fallthru
          _
      $region24: #{tpu_custom_call.1} parent=5 // pred_fallthru
        _
      %p191 = scmp.le.s32.totalorder 1, %s12
      %p192 = scmp.lt.s32.totalorder %s12, 3
      %p193 = pnand %p191, %p192
      %p194 = pneg %p193
      // Predicated region
      $region29: #{tpu_custom_call.1} parent=5 // pred_check
        _
      $region30: #{tpu_custom_call.1} parent=5 // pred_check_branch
        %196 = sbr.rel (%p193) target = $region32
      $region31: #{tpu_custom_call.1} parent=5 // pred_region
        %s197 = ssub.s32 %s12, 1
        %s198 = sand.u32 %s39, 1
        %s199 = scalar_lea.sflag [#allocation3], %s198
        %s200 = sand.u32 %s39, 1
        %s201 = smul.addr %s200, 64
        %s202 = scalar_lea.vmem [#allocation2], %s201
        // Predicated region
        $region33: #{tpu_custom_call.1} parent=31 // pred_check
          %p203 = pneg %p52
        $region34: #{tpu_custom_call.1} parent=31 // pred_check_branch
          %205 = sbr.rel (%p203) target = $region36
        $region35: #{tpu_custom_call.1} parent=31 // pred_region
          %206 = dma.done %s199, 1024
        $region36: #{tpu_custom_call.1} parent=31 // pred_fallthru
          _
        %s207 = sand.u32 %s39, 1
        %s208 = scalar_lea.sflag [#allocation3], %s207
        %s209 = sand.u32 %s39, 1
        %s210 = smul.addr %s209, 64
        %s211 = scalar_lea.vmem [#allocation2], %s210
        %p212 = pneg %p52
        %p213 = pneg %p49
        %s214 = smul.u32 4, %s21
        %p215 = scmp.lt.s32.totalorder %s214, 3
        %s216 = scalar_select %p215, %s214, 3
        %s217 = scalar_lea.vmem %s1, %s216
        %p218 = pneg %p78
        %p219 = pneg %p75
        %s220 = smul.u32 4, %s21
        %p221 = scmp.lt.s32.totalorder %s220, 3
        %s222 = scalar_select %p221, %s220, 3
        %s223 = scalar_lea.vmem %s2, %s222
        %p224 = pneg %p104
        %p225 = pneg %p101
        %p226 = pneg %p132
        %p227 = pneg %p129
        %s228 = smul.u32 4, %s21
        %p229 = scmp.lt.s32.totalorder %s22, 1
        %s230 = scalar_select %p229, %s22, 1
        %p231 = scmp.lt.s32.totalorder %s228, 3
        %s232 = scalar_select %p231, %s228, 3
        %s233 = smul.addr %s232, 3
        %s234 = smul.addr %s230, 12
        %s235 = sadd.s32 %s233, %s234
        %s236 = smul.addr %s235, 8
        %s237 = scalar_lea.vmem %s3, %s236
        %s238 = smul.u32 4, %s21
        %s239 = smul.u32 4, %s21
        %p240 = scmp.lt.s32.totalorder %s239, 3
        %s241 = scalar_select %p240, %s239, 3
        %s242 = scalar_lea.vmem %s1, %s241
        %s243 = smul.u32 4, %s21
        %s244 = smul.u32 4, %s21
        %p245 = scmp.lt.s32.totalorder %s244, 3
        %s246 = scalar_select %p245, %s244, 3
        %s247 = scalar_lea.vmem %s2, %s246
        %s248 = smul.u32 4, %s21
        %s249 = smul.u32 4, %s21
        %p250 = scmp.lt.s32.totalorder %s22, 1
        %s251 = scalar_select %p250, %s22, 1
        %p252 = scmp.lt.s32.totalorder %s249, 3
        %s253 = scalar_select %p252, %s249, 3
        %s254 = smul.addr %s253, 3
        %s255 = smul.addr %s251, 12
        %s256 = sadd.s32 %s254, %s255
        %s257 = smul.addr %s256, 8
        %s258 = scalar_lea.vmem %s3, %s257
        %s259 = smul.u32 4, %s21
        %v260 = vld [vmem:[%s242] sm:$0x1]
        %v261 = vld [vmem:[%s242 + $0x1] sm:$0x1]
        %v262 = vld [vmem:[%s242 + $0x2] sm:$0x1]
        %v263 = vld [vmem:[%s242 + $0x3] sm:$0x1]
        %v264 = vld [vmem:[%s247] sm:$0x1]
        %v265 = vld [vmem:[%s247 + $0x1] sm:$0x1]
        %v266 = vld [vmem:[%s247 + $0x2] sm:$0x1]
        %v267 = vld [vmem:[%s247 + $0x3] sm:$0x1]
        %v268 = vld [vmem:[%s202] sm:$0xff]
        %v269 = vld [vmem:[%s202 + $0x8] sm:$0xff]
        %v270 = vld [vmem:[%s202 + $0x10] sm:$0xff]
        %v271 = vld [vmem:[%s202 + $0x18] sm:$0xff]
        %v272 = vld [vmem:[%s202 + $0x20] sm:$0xff]
        %v273 = vld [vmem:[%s202 + $0x28] sm:$0xff]
        %v274 = vld [vmem:[%s202 + $0x30] sm:$0xff]
        %v275 = vld [vmem:[%s202 + $0x38] sm:$0xff]
        %v280 = vlaneseq
        %v281 = vshrl.u32 %v280, 7
        %v282 = vsub.s32 0, %v281
        %v283 = vrot.slane %v260, %v282
        %v284 = vlaneseq
        %v285 = vshrl.u32 %v284, 7
        %v286 = vsub.s32 0, %v285
        %v287 = vrot.slane %v261, %v286
        %v288 = vlaneseq
        %v289 = vshrl.u32 %v288, 7
        %v290 = vsub.s32 0, %v289
        %v291 = vrot.slane %v262, %v290
        %v292 = vlaneseq
        %v293 = vshrl.u32 %v292, 7
        %v294 = vsub.s32 0, %v293
        %v295 = vrot.slane %v263, %v294
        %296 = vset.pattern.permute.xlu0 0
        %297 = vperm.xlu0 %296, %v283
        %v298 = vpop.permute.xlu0 %297
        %300 = vset.pattern.permute.xlu0 0
        %301 = vperm.xlu0 %300, %v287
        %v302 = vpop.permute.xlu0 %301
        %304 = vset.pattern.permute.xlu0 0
        %305 = vperm.xlu0 %304, %v291
        %v306 = vpop.permute.xlu0 %305
        %308 = vset.pattern.permute.xlu0 0
        %309 = vperm.xlu0 %308, %v295
        %v310 = vpop.permute.xlu0 %309
        %v312 = vmul.f32 %v268, %v298
        %v313 = vmul.f32 %v269, %v298
        %v314 = vmul.f32 %v270, %v302
        %v315 = vmul.f32 %v271, %v302
        %v316 = vmul.f32 %v272, %v306
        %v317 = vmul.f32 %v273, %v306
        %v318 = vmul.f32 %v274, %v310
        %v319 = vmul.f32 %v275, %v310
        %v324 = vlaneseq
        %v325 = vshrl.u32 %v324, 7
        %v326 = vsub.s32 0, %v325
        %v327 = vrot.slane %v264, %v326
        %v328 = vlaneseq
        %v329 = vshrl.u32 %v328, 7
        %v330 = vsub.s32 0, %v329
        %v331 = vrot.slane %v265, %v330
        %v332 = vlaneseq
        %v333 = vshrl.u32 %v332, 7
        %v334 = vsub.s32 0, %v333
        %v335 = vrot.slane %v266, %v334
        %v336 = vlaneseq
        %v337 = vshrl.u32 %v336, 7
        %v338 = vsub.s32 0, %v337
        %v339 = vrot.slane %v267, %v338
        %340 = vset.pattern.permute.xlu0 0
        %341 = vperm.xlu0 %340, %v327
        %v342 = vpop.permute.xlu0 %341
        %344 = vset.pattern.permute.xlu0 0
        %345 = vperm.xlu0 %344, %v331
        %v346 = vpop.permute.xlu0 %345
        %348 = vset.pattern.permute.xlu0 0
        %349 = vperm.xlu0 %348, %v335
        %v350 = vpop.permute.xlu0 %349
        %352 = vset.pattern.permute.xlu0 0
        %353 = vperm.xlu0 %352, %v339
        %v354 = vpop.permute.xlu0 %353
        %v356 = vadd.f32 %v312, %v342
        %v357 = vadd.f32 %v313, %v342
        %v358 = vadd.f32 %v314, %v346
        %v359 = vadd.f32 %v315, %v346
        %v360 = vadd.f32 %v316, %v350
        %v361 = vadd.f32 %v317, %v350
        %v362 = vadd.f32 %v318, %v354
        %v363 = vadd.f32 %v319, %v354
        %376 = vrot.lane.b32.xlu0 %v356, 1
        %v377 = vpop.permute.xlu0 %376
        %378 = vrot.lane.b32.xlu0 %v357, 1
        %v379 = vpop.permute.xlu0 %378
        %380 = vrot.lane.b32.xlu0 %v358, 1
        %v381 = vpop.permute.xlu0 %380
        %382 = vrot.lane.b32.xlu0 %v359, 1
        %v383 = vpop.permute.xlu0 %382
        %384 = vrot.lane.b32.xlu0 %v360, 1
        %v385 = vpop.permute.xlu0 %384
        %386 = vrot.lane.b32.xlu0 %v361, 1
        %v387 = vpop.permute.xlu0 %386
        %388 = vrot.lane.b32.xlu0 %v362, 1
        %v389 = vpop.permute.xlu0 %388
        %390 = vrot.lane.b32.xlu0 %v363, 1
        %v391 = vpop.permute.xlu0 %390
        %400 = vrot.lane.b32.xlu0 %v327, 17
        %v401 = vpop.permute.xlu0 %400
        %402 = vrot.lane.b32.xlu0 %v331, 17
        %v403 = vpop.permute.xlu0 %402
        %404 = vrot.lane.b32.xlu0 %v335, 17
        %v405 = vpop.permute.xlu0 %404
        %406 = vrot.lane.b32.xlu0 %v339, 17
        %v407 = vpop.permute.xlu0 %406
        %vm412 = vcmask 7168
        %v413 = vsel %vm412, %v327, %v377
        %v414 = vsel %vm412, %v327, %v379
        %v415 = vsel %vm412, %v331, %v381
        %v416 = vsel %vm412, %v331, %v383
        %v417 = vsel %vm412, %v335, %v385
        %v418 = vsel %vm412, %v335, %v387
        %v419 = vsel %vm412, %v339, %v389
        %v420 = vsel %vm412, %v339, %v391
        %vm421 = vcmask 138240
        %v422 = vsel %vm421, %v413, %v401
        %v423 = vsel %vm421, %v414, %v401
        %v424 = vsel %vm421, %v415, %v403
        %v425 = vsel %vm421, %v416, %v403
        %v426 = vsel %vm421, %v417, %v405
        %v427 = vsel %vm421, %v418, %v405
        %v428 = vsel %vm421, %v419, %v407
        %v429 = vsel %vm421, %v420, %v407
        %430 = vset.pattern.permute.xlu0 0
        %431 = vperm.xlu0 %430, %v264
        %v432 = vpop.permute.xlu0 %431
        %v434 = vlaneseq
        %v435 = vshrl.u32 %v434, 7
        %v436 = vsub.s32 0, %v435
        %v437 = vrot.slane %v432, %v436
        %438 = vset.pattern.permute.xlu0 0
        %439 = vperm.xlu0 %438, %v265
        %v440 = vpop.permute.xlu0 %439
        %v442 = vlaneseq
        %v443 = vshrl.u32 %v442, 7
        %v444 = vsub.s32 0, %v443
        %v445 = vrot.slane %v440, %v444
        %446 = vset.pattern.permute.xlu0 0
        %447 = vperm.xlu0 %446, %v266
        %v448 = vpop.permute.xlu0 %447
        %v450 = vlaneseq
        %v451 = vshrl.u32 %v450, 7
        %v452 = vsub.s32 0, %v451
        %v453 = vrot.slane %v448, %v452
        %454 = vset.pattern.permute.xlu0 0
        %455 = vperm.xlu0 %454, %v267
        %v456 = vpop.permute.xlu0 %455
        %v458 = vlaneseq
        %v459 = vshrl.u32 %v458, 7
        %v460 = vsub.s32 0, %v459
        %v461 = vrot.slane %v456, %v460
        %vm470 = vcmask 1040384
        %v471 = vrot.slane %v422, 7
        %v472 = vrot.slane %v423, 7
        %v473 = vsel %vm470, %v471, %v472
        %v474 = vrot.slane %v424, 7
        %v475 = vrot.slane %v425, 7
        %v476 = vsel %vm470, %v474, %v475
        %v477 = vrot.slane %v426, 7
        %v478 = vrot.slane %v427, 7
        %v479 = vsel %vm470, %v477, %v478
        %v480 = vrot.slane %v428, 7
        %v481 = vrot.slane %v429, 7
        %v482 = vsel %vm470, %v480, %v481
        %v495 = vsel %vm470, %v437, %v471
        %v496 = vsel %vm470, %v445, %v474
        %v497 = vsel %vm470, %v453, %v477
        %v498 = vsel %vm470, %v461, %v480
        %v499 = vsel %vm470, %v472, %v437
        %v500 = vsel %vm470, %v475, %v445
        %v501 = vsel %vm470, %v478, %v453
        %v502 = vsel %vm470, %v481, %v461
        %vm503 = vcmask 146432
        %504 = vst.msk [vmem:[%s258] sm:$0xff] %vm503, %v495
        %505 = vst.msk [vmem:[%s258 + $0x8] sm:$0xff] %vm503, %v473
        %vm506 = vcmask 140288
        %507 = vst.msk [vmem:[%s258 + $0x10] sm:$0x3] %vm506, %v499
        %508 = vst.msk [vmem:[%s258 + $0x18] sm:$0xff] %vm503, %v496
        %509 = vst.msk [vmem:[%s258 + $0x20] sm:$0xff] %vm503, %v476
        %510 = vst.msk [vmem:[%s258 + $0x28] sm:$0x3] %vm506, %v500
        %511 = vst.msk [vmem:[%s258 + $0x30] sm:$0xff] %vm503, %v497
        %512 = vst.msk [vmem:[%s258 + $0x38] sm:$0xff] %vm503, %v479
        %513 = vst.msk [vmem:[%s258 + $0x40] sm:$0x3] %vm506, %v501
        %514 = vst.msk [vmem:[%s258 + $0x48] sm:$0xff] %vm503, %v498
        %515 = vst.msk [vmem:[%s258 + $0x50] sm:$0xff] %vm503, %v482
        %516 = vst.msk [vmem:[%s258 + $0x58] sm:$0x3] %vm506, %v502
        %s517 = smul.u32 4, %s21
        %p518 = scmp.lt.s32.totalorder %s22, 1
        %s519 = scalar_select %p518, %s22, 1
        %p520 = scmp.lt.s32.totalorder %s517, 3
        %s521 = scalar_select %p520, %s517, 3
        %s522 = smul.addr %s521, 3
        %s523 = smul.addr %s519, 12
        %s524 = sadd.s32 %s522, %s523
        %s525 = smul.addr %s524, 8
        %s526 = scalar_lea.vmem %s3, %s525
        // Predicated region
        $region37: #{tpu_custom_call.1} parent=31 // pred_check
          %p527 = pneg %p129
        $region38: #{tpu_custom_call.1} parent=31 // pred_check_branch
          %529 = sbr.rel (%p527) target = $region40
        $region39: #{tpu_custom_call.1} parent=31 // pred_region
          %s530 = smul.u32 4, %s21
        $region40: #{tpu_custom_call.1} parent=31 // pred_fallthru
          _
      $region32: #{tpu_custom_call.1} parent=5 // pred_fallthru
        _
      %p531 = scmp.le.s32.totalorder 2, %s12
      // Predicated region
      $region41: #{tpu_custom_call.1} parent=5 // pred_check
        %p532 = pneg %p531
      $region42: #{tpu_custom_call.1} parent=5 // pred_check_branch
        %534 = sbr.rel (%p532) target = $region44
      $region43: #{tpu_custom_call.1} parent=5 // pred_region
        %s535 = ssub.s32 %s12, 2
        // Predicated region
        $region45: #{tpu_custom_call.1} parent=43 // pred_check
          %p536 = pneg %p135
        $region46: #{tpu_custom_call.1} parent=43 // pred_check_branch
          %538 = sbr.rel (%p536) target = $region48
        $region47: #{tpu_custom_call.1} parent=43 // pred_region
          %s539 = smul.u32 4, %s23
          %p540 = scmp.lt.s32.totalorder %s24, 1
          %s541 = scalar_select %p540, %s24, 1
          %p542 = scmp.lt.s32.totalorder %s539, 3
          %s543 = scalar_select %p542, %s539, 3
          %s544 = smul.addr %s543, 3
          %s545 = smul.addr %s541, 12
          %s546 = sadd.s32 %s544, %s545
          %s547 = smul.addr %s546, 8
          %s548 = scalar_lea.vmem %s3, %s547
        $region48: #{tpu_custom_call.1} parent=43 // pred_fallthru
          _
      $region44: #{tpu_custom_call.1} parent=5 // pred_fallthru
        _
    $region6: #{tpu_custom_call.1} parent=1 // loop_footer
      %s16 = sadd.s32 1, %s12
    $region7: #{tpu_custom_call.1} parent=1 // loop_footer_branch
      %11 = sbr.rel target = $region3
    $region8: #{tpu_custom_call.1} parent=1 // loop_exit
      _
    %549 = vsyncpa [#allocation3], 1
    %s550 = scalar_lea.sflag [#allocation3], 1
    %551 = vsyncpa %s550, 1

</llo_original>
